<compile_context>
chip_gen: v5e
topology: v5e:2x2
jax: 0.10.0
libtpu: 0.0.40
codegen_flags: <defaults>
</compile_context>

<pallas_src>
import jax
import jax.numpy as jnp
from jax.experimental import pallas as pl
from jax.experimental.pallas import tpu as pltpu


def _round_up(x, m):
    return (x + m - 1) // m * m


def _cdiv(a, b):
    return -(-a // b)


def _maegin_decoder_kernel(adj_ref, xw_ref, b_ref, out_ref, acc_ref):
    k = pl.program_id(1)

    @pl.when(k == 0)
    def _():
        acc_ref[...] = jnp.zeros_like(acc_ref)

    # int8 -> bf16 upcast is exact (edge counts are small integers) and is VPU
    # filler while the next adjacency tile's DMA is in flight.  Both operands
    # bf16 -> native single-pass MXU matmul, accumulated in f32.
    adj = adj_ref[...].astype(jnp.bfloat16)
    acc_ref[...] += jnp.dot(adj, xw_ref[...], preferred_element_type=jnp.float32)

    @pl.when(k == pl.num_programs(1) - 1)
    def _():
        out_ref[...] = (acc_ref[...] + b_ref[...]).astype(out_ref.dtype)


def maegin_decoder(x, edge_index, w1, b1, w2, b2):
    """MAEGINDecoder forward.

    x:          [N, hidden] float
    edge_index: [2, E] int32 (row 0 = src, row 1 = dst)
    w1: [hidden, middle], b1: [middle]   (trn weights, stored as weight.T)
    w2: [middle, vocab],  b2: [vocab]    (prd weights, stored as weight.T)
    returns [N, vocab] float32
    """
    n, hidden = x.shape
    vocab = w2.shape[1]

    # ---- glue (not the hot path) -------------------------------------------
    # Fuse the two bias-only Linears, then pre-apply them to x.
    w2f = w2.astype(jnp.float32)
    w12 = w1.astype(jnp.float32) @ w2f                       # [hidden, vocab]
    b12 = b1.astype(jnp.float32) @ w2f + b2.astype(jnp.float32)
    xw = x.astype(jnp.float32) @ w12                         # [n, vocab], tiny

    v_pad = _round_up(vocab, 128)            # lane-dense output stores

    # Row tile (parallel grid axis): multiple of 32 (int8 sublane tiling) and
    # >= 2 grid steps whenever there is enough work so both v7x TensorCores get
    # a share, while keeping row zero-padding minimal.
    row32 = _round_up(n, 32)
    if row32 <= 64:
        tm, row_pad = row32, row32
    else:
        n_row_tiles = max(2, _cdiv(row32, 256))
        tm = _round_up(_cdiv(row32, n_row_tiles), 32)
        row_pad = tm * n_row_tiles

    # Contraction tile (reduction axis, last in the grid): bounded so the
    # per-step footprint is independent of N; contraction padding decoupled
    # from row padding (only ~round_up(n, 128) worth of zeros is streamed).
    k128 = _round_up(n, 128)
    k_steps = _cdiv(k128, 2048)
    tk = _round_up(_cdiv(k128, k_steps), 128)
    k_pad = tk * k_steps

    # (A + I) built in its storage dtype and padded shape with a single int8
    # scatter (self-loops folded into the indices).  Exact for per-(dst, src)
    # edge multiplicities up to 127.
    diag = jnp.arange(n, dtype=edge_index.dtype)
    rows = jnp.concatenate([edge_index[1], diag])
    cols = jnp.concatenate([edge_index[0], diag])
    adj_p = jnp.zeros((row_pad, k_pad), jnp.int8).at[rows, cols].add(jnp.int8(1))

    xw_p = jnp.pad(xw, ((0, k_pad - n), (0, v_pad - vocab))).astype(jnp.bfloat16)
    b_p = jnp.pad(b12, ((0, v_pad - vocab),)).reshape(1, v_pad)

    # VMEM accounting: double-buffered pipeline blocks + f32 accumulator + the
    # in-kernel int8->bf16 cast temporary, plus headroom.  Capped at 40 MiB so
    # it is safe even on v7x (64 MiB physical).
    step_bytes = (
        2 * (tm * tk * 1            # adjacency block, int8
             + tk * v_pad * 2       # xw block, bf16
             + tm * v_pad * 4       # output block, f32
             + 8 * v_pad * 4)       # bias block (sublane-padded), f32
        + tm * v_pad * 4            # accumulator scratch
        + tm * tk * 2               # in-kernel bf16 cast temporary
    )
    vmem_limit = int(min(max(step_bytes + (4 << 20), 16 << 20), 40 << 20))

    out_p = pl.pallas_call(
        _maegin_decoder_kernel,
        out_shape=jax.ShapeDtypeStruct((row_pad, v_pad), jnp.float32),
        grid=(row_pad // tm, k_pad // tk),
        in_specs=[
            pl.BlockSpec((tm, tk), lambda i, k: (i, k)),      # adjacency stream
            pl.BlockSpec((tk, v_pad), lambda i, k: (k, 0)),   # xw (bf16)
            pl.BlockSpec((1, v_pad), lambda i, k: (0, 0)),    # fused bias (512 B)
        ],
        out_specs=pl.BlockSpec((tm, v_pad), lambda i, k: (i, 0)),
        scratch_shapes=[pltpu.VMEM((tm, v_pad), jnp.float32)],
        compiler_params=pltpu.CompilerParams(
            dimension_semantics=("parallel", "arbitrary"),
            vmem_limit_bytes=vmem_limit,
        ),
    )(adj_p, xw_p, b_p)

    return out_p[:n, :vocab]


if __name__ == "__main__":
    # Module hyper-parameters (consistent with MAEGINDecoder.__init__).
    node_dict_size = 64
    hidden_dim = 32
    middle_dim = hidden_dim + int((node_dict_size - hidden_dim) / 2)  # = 48

    key = jax.random.PRNGKey(0)
    k_w1, k_b1, k_w2, k_b2, k_small, k_large = jax.random.split(key, 6)

    # Deterministic synthetic parameters (PyTorch-Linear-like uniform init),
    # stored as [in_dim, out_dim] (i.e. weight.T relative to nn.Linear).
    lim1 = 1.0 / (hidden_dim ** 0.5)
    lim2 = 1.0 / (middle_dim ** 0.5)
    w1 = jax.random.uniform(k_w1, (hidden_dim, middle_dim), jnp.float32, -lim1, lim1)
    b1 = jax.random.uniform(k_b1, (middle_dim,), jnp.float32, -lim1, lim1)
    w2 = jax.random.uniform(k_w2, (middle_dim, node_dict_size), jnp.float32, -lim2, lim2)
    b2 = jax.random.uniform(k_b2, (node_dict_size,), jnp.float32, -lim2, lim2)

    def make_graph(k, num_nodes, num_edges):
        kx, ks, kd = jax.random.split(k, 3)
        x = jax.random.normal(kx, (num_nodes, hidden_dim), jnp.float32)
        src = jax.random.randint(ks, (num_edges,), 0, num_nodes, jnp.int32)
        dst = jax.random.randint(kd, (num_edges,), 0, num_nodes, jnp.int32)
        return x, jnp.stack([src, dst], axis=0)

    # Small case (matches the module's toy sizes) + a larger case that
    # exercises the multi-step row grid, K tiling and all padding paths.
    cases = [make_graph(k_small, 16, 24), make_graph(k_large, 300, 900)]

    for x, edge_index in cases:
        out = jax.block_until_ready(maegin_decoder(x, edge_index, w1, b1, w2, b2))

        # Plain-JAX reference (unfused GIN scatter-add + two Linears, f32).
        agg = jnp.zeros_like(x).at[edge_index[1]].add(x[edge_index[0]])
        ref = ((x + agg) @ w1 + b1) @ w2 + b2

        assert out.shape == ref.shape, (out.shape, ref.shape)
        max_err = float(jnp.max(jnp.abs(out - ref)))
        # The adjacency path is exact (integer counts); tolerance only needs to
        # cover bf16 rounding of the xw operand fed to the native-mode MXU.
        assert jnp.allclose(out, ref, atol=2e-2, rtol=2e-2), max_err

    print("KERNEL_OK")
</pallas_src>

<mosaic_0001>
module attributes {stable_mosaic.version = 11 : i64} {
  func.func @_maegin_decoder_kernel(%arg0: i32, %arg1: i32, %arg2: memref<32x128xi8, #tpu.memory_space<vmem>>, %arg3: memref<128x128xbf16, #tpu.memory_space<vmem>>, %arg4: memref<1x128xf32, #tpu.memory_space<vmem>>, %arg5: memref<32x128xf32, #tpu.memory_space<vmem>>, %arg6: memref<32x128xf32, #tpu.memory_space<vmem>>) attributes {dimension_semantics = [#tpu.dimension_semantics<parallel>, #tpu.dimension_semantics<arbitrary>], iteration_bounds = array<i64: 1, 1>, scalar_prefetch = 0 : i64, scratch_operands = 1 : i64, tpu.core_type = #tpu.core_type<tc>, window_params = [{transform_indices = @transform_0, window_bounds = array<i64: 32, 128>}, {transform_indices = @transform_1, window_bounds = array<i64: 128, 128>}, {pipeline_mode = #tpu.pipeline_mode<synchronous>, transform_indices = @transform_2, window_bounds = array<i64: 1, 128>}, {transform_indices = @transform_3, window_bounds = array<i64: 32, 128>}]} {
    %c0_i32 = arith.constant 0 : i32
    %0 = arith.cmpi eq, %arg1, %c0_i32 : i32
    %1 = arith.extui %0 : i1 to i32
    %c0_i32_0 = arith.constant 0 : i32
    %2 = arith.cmpi ne, %1, %c0_i32_0 : i32
    scf.if %2 {
      %cst_10 = arith.constant 0.000000e+00 : f32
      %13 = vector.broadcast %cst_10 : f32 to vector<32x128xf32>
      %c0_11 = arith.constant 0 : index
      %c0_12 = arith.constant 0 : index
      %14 = vector.load %arg6[%c0_11, %c0_12] : memref<32x128xf32, #tpu.memory_space<vmem>>, vector<32x128xf32>
      tpu.vector_store %arg6[%c0_11, %c0_12], %13 {strides = array<i32>} : memref<32x128xf32, #tpu.memory_space<vmem>>, vector<32x128xf32>,
    } else {
    }
    %c0 = arith.constant 0 : index
    %c0_1 = arith.constant 0 : index
    %3 = vector.load %arg2[%c0, %c0_1] : memref<32x128xi8, #tpu.memory_space<vmem>>, vector<32x128xi8>
    %4 = arith.sitofp %3 : vector<32x128xi8> to vector<32x128xbf16>
    %c0_2 = arith.constant 0 : index
    %c0_3 = arith.constant 0 : index
    %5 = vector.load %arg6[%c0_2, %c0_3] : memref<32x128xf32, #tpu.memory_space<vmem>>, vector<32x128xf32>
    %c0_4 = arith.constant 0 : index
    %c0_5 = arith.constant 0 : index
    %6 = vector.load %arg3[%c0_4, %c0_5] : memref<128x128xbf16, #tpu.memory_space<vmem>>, vector<128x128xbf16>
    %cst = arith.constant dense<0.000000e+00> : vector<32x128xf32>
    %7 = tpu.matmul %4, %6, %cst {dimension_numbers = #tpu.dot_dimension_numbers<[1], [0], [0], [1], [0, 0, 1, 1], [], []>} : vector<32x128xbf16>, vector<128x128xbf16>, vector<32x128xf32> -> vector<32x128xf32>
    %8 = arith.addf %5, %7 : vector<32x128xf32>
    %c0_6 = arith.constant 0 : index
    %c0_7 = arith.constant 0 : index
    %9 = vector.load %arg6[%c0_6, %c0_7] : memref<32x128xf32, #tpu.memory_space<vmem>>, vector<32x128xf32>
    tpu.vector_store %arg6[%c0_6, %c0_7], %8 {strides = array<i32>} : memref<32x128xf32, #tpu.memory_space<vmem>>, vector<32x128xf32>,
    %c0_i32_8 = arith.constant 0 : i32
    %10 = arith.cmpi eq, %arg1, %c0_i32_8 : i32
    %11 = arith.extui %10 : i1 to i32
    %c0_i32_9 = arith.constant 0 : i32
    %12 = arith.cmpi ne, %11, %c0_i32_9 : i32
    scf.if %12 {
      %c0_10 = arith.constant 0 : index
      %c0_11 = arith.constant 0 : index
      %13 = vector.load %arg6[%c0_10, %c0_11] : memref<32x128xf32, #tpu.memory_space<vmem>>, vector<32x128xf32>
      %c0_12 = arith.constant 0 : index
      %c0_13 = arith.constant 0 : index
      %14 = vector.load %arg4[%c0_12, %c0_13] : memref<1x128xf32, #tpu.memory_space<vmem>>, vector<1x128xf32>
      %15 = vector.broadcast %14 : vector<1x128xf32> to vector<32x128xf32>
      %16 = arith.addf %13, %15 : vector<32x128xf32>
      %c0_14 = arith.constant 0 : index
      %c0_15 = arith.constant 0 : index
      %17 = vector.load %arg5[%c0_14, %c0_15] : memref<32x128xf32, #tpu.memory_space<vmem>>, vector<32x128xf32>
      tpu.vector_store %arg5[%c0_14, %c0_15], %16 {strides = array<i32>} : memref<32x128xf32, #tpu.memory_space<vmem>>, vector<32x128xf32>,
    } else {
    }
    return
  }
  func.func @transform_0(%arg0: i32, %arg1: i32) -> (i32, i32) {
    %c0_i32 = arith.constant 0 : i32
    return %arg0, %arg1 : i32, i32
  }
  func.func @transform_1(%arg0: i32, %arg1: i32) -> (i32, i32) {
    %c0_i32 = arith.constant 0 : i32
    %c0_i32_0 = arith.constant 0 : i32
    return %arg1, %c0_i32 : i32, i32
  }
  func.func @transform_2(%arg0: i32, %arg1: i32) -> (i32, i32) {
    %c0_i32 = arith.constant 0 : i32
    %c0_i32_0 = arith.constant 0 : i32
    %c0_i32_1 = arith.constant 0 : i32
    return %c0_i32, %c0_i32_0 : i32, i32
  }
  func.func @transform_3(%arg0: i32, %arg1: i32) -> (i32, i32) {
    %c0_i32 = arith.constant 0 : i32
    %c0_i32_0 = arith.constant 0 : i32
    return %arg0, %c0_i32 : i32, i32
  }
}

</mosaic_0001>

<llo_original>
// kernel: tpu_custom_call.1
$region0: #{tpu_custom_call.1}
  #allocation0 [shape = 'u32[]', space=smem, size = 0x4, offset = 0x4, fixed_abs, tag = 'smem constant byte address 0x4 - core index']
  #allocation1 [shape = 'u32[72,128]{1,0:T(1,128)}', space=vmem, size = 0x9000, scoped, tag = 'internal scratch']
  #allocation2 [shape = 'f32[32,128]{1,0:T(8,128)}', space=vmem, size = 0x4000, scoped, tag = 'scratch operand']
  %s0 = inlined_call_operand.hbm [shape: s8[32,128], index: 0, kind: input, shape index: {}]
  %s1 = inlined_call_operand.hbm [shape: bf16[128,128], index: 1, kind: input, shape index: {}]
  %s2 = inlined_call_operand.vmem [shape: f32[1,128], index: 2, kind: input, shape index: {}]
  %s3 = inlined_call_operand.hbm [shape: f32[32,128], index: 3, kind: output, shape index: {}]
  %s4 = sld [smem:[#allocation0]]
  $region38: #{tpu_custom_call.1} parent=0
    _
  %s6 = ssub.s32 1, %s4
  %s7 = scalar_select 0, %s6, %s4
  $region1: #{tpu_custom_call.1} parent=0
    #allocation3 [shape = 'u8[4096]{0}', space=vmem, size = 0x1000, scoped, tag = 'input window, operand 0, single buffered']
    #allocation4 [shape = 's32[1]{0}', space=sflag, size = 0x4, scoped, tag = 'scoped memory for tpu_custom_call.1']
    #allocation5 [shape = 's32[1]{0}', space=sflag, size = 0x4, scoped, tag = 'scoped memory for tpu_custom_call.1']
    #allocation6 [shape = 'u8[32768]{0}', space=vmem, size = 0x8000, scoped, tag = 'input window, operand 1, single buffered']
    #allocation7 [shape = 's32[1]{0}', space=sflag, size = 0x4, scoped, tag = 'scoped memory for tpu_custom_call.1']
    #allocation8 [shape = 'u8[16384]{0}', space=vmem, size = 0x4000, scoped, tag = 'output window, operand 0, single buffered']
    %8 = vsyncpa [#allocation4], 0
    %9 = vsyncpa [#allocation7], 0
    %10 = vsyncpa [#allocation5], 0
    // Predicated region
    $region2: #{tpu_custom_call.1} parent=1 // pred_check
      _
    $region3: #{tpu_custom_call.1} parent=1 // pred_check_branch
      %12 = sbr.rel (0) target = $region5
    $region4: #{tpu_custom_call.1} parent=1 // pred_region
      %14 = vsyncadd [#allocation4], 0
      %s16 = sshll.u32 %s0, 4
      %s17 = int_to_ptr.hbm [resolvable:$true] %s16
      %s18 = sshll.u32 [#allocation3], 4
      %s19 = int_to_ptr.vmem [resolvable:$true] %s18
      %21 = dma.hbm_to_vmem [thread:$0]  %s17, 128, %s19, [#allocation4]
    $region5: #{tpu_custom_call.1} parent=1 // pred_fallthru
      _
    // Predicated region
    $region6: #{tpu_custom_call.1} parent=1 // pred_check
      _
    $region7: #{tpu_custom_call.1} parent=1 // pred_check_branch
      %23 = sbr.rel (0) target = $region9
    $region8: #{tpu_custom_call.1} parent=1 // pred_region
      %25 = vsyncadd [#allocation7], 0
      %s26 = sshll.u32 %s1, 4
      %s27 = int_to_ptr.hbm [resolvable:$true] %s26
      %s28 = sshll.u32 [#allocation6], 4
      %s29 = int_to_ptr.vmem [resolvable:$true] %s28
      %34 = dma.hbm_to_vmem [thread:$0]  %s27, 1024, %s29, [#allocation7], 64, 64, 4
    $region9: #{tpu_custom_call.1} parent=1 // pred_fallthru
      _
    // Predicated region
    $region10: #{tpu_custom_call.1} parent=1 // pred_check
      _
    $region11: #{tpu_custom_call.1} parent=1 // pred_check_branch
      %36 = sbr.rel (0) target = $region13
    $region12: #{tpu_custom_call.1} parent=1 // pred_region
      _
    $region13: #{tpu_custom_call.1} parent=1 // pred_fallthru
      _
    // Predicated region
    $region14: #{tpu_custom_call.1} parent=1 // pred_check
      _
    $region15: #{tpu_custom_call.1} parent=1 // pred_check_branch
      %38 = sbr.rel (0) target = $region17
    $region16: #{tpu_custom_call.1} parent=1 // pred_region
      %40 = dma.done [#allocation4], 128
    $region17: #{tpu_custom_call.1} parent=1 // pred_fallthru
      _
    // Predicated region
    $region18: #{tpu_custom_call.1} parent=1 // pred_check
      _
    $region19: #{tpu_custom_call.1} parent=1 // pred_check_branch
      %42 = sbr.rel (0) target = $region21
    $region20: #{tpu_custom_call.1} parent=1 // pred_region
      %44 = dma.done [#allocation7], 1024
    $region21: #{tpu_custom_call.1} parent=1 // pred_fallthru
      _
    %p45 = scmp.eq.s32.totalorder 0, 0
    // Predicated region
    $region22: #{tpu_custom_call.1} parent=1 // pred_check
      %p46 = pneg %p45
    $region23: #{tpu_custom_call.1} parent=1 // pred_check_branch
      %48 = sbr.rel (%p46) target = $region25
    $region24: #{tpu_custom_call.1} parent=1 // pred_region
      %49 = vst [vmem:[#allocation2] sm:$0xff] 0.0
      %50 = vst [vmem:[#allocation2 + $0x8] sm:$0xff] 0.0
      %51 = vst [vmem:[#allocation2 + $0x10] sm:$0xff] 0.0
      %52 = vst [vmem:[#allocation2 + $0x18] sm:$0xff] 0.0
    $region25: #{tpu_custom_call.1} parent=1 // pred_fallthru
      _
    %v53 = vld [vmem:[#allocation3] sm:$0xff]
    %v54 = vunpack.c.0.s8 %v53
    %v55 = vunpack.c.1.s8 %v53
    %v56 = vunpack.c.2.s8 %v53
    %v57 = vunpack.c.3.s8 %v53
    %v58 = vcvt.s32.f32 %v54
    %v59 = vcvt.s32.f32 %v55
    %v60 = vcvt.s32.f32 %v56
    %v61 = vcvt.s32.f32 %v57
    %v62 = vpack.c.bf16 %v59, %v58
    %v63 = vpack.c.bf16 %v61, %v60
    %v64 = vld [vmem:[#allocation2] sm:$0xff]
    %v65 = vld [vmem:[#allocation2 + $0x8] sm:$0xff]
    %v66 = vld [vmem:[#allocation2 + $0x10] sm:$0xff]
    %v67 = vld [vmem:[#allocation2 + $0x18] sm:$0xff]
    %v68 = vld [vmem:[#allocation6] sm:$0xf]
    %v69 = vld [vmem:[#allocation6 + $0x4] sm:$0xf]
    %v70 = vld [vmem:[#allocation6 + $0x8] sm:$0xf]
    %v71 = vld [vmem:[#allocation6 + $0xc] sm:$0xf]
    %v72 = vld [vmem:[#allocation6 + $0x10] sm:$0xf]
    %v73 = vld [vmem:[#allocation6 + $0x14] sm:$0xf]
    %v74 = vld [vmem:[#allocation6 + $0x18] sm:$0xf]
    %v75 = vld [vmem:[#allocation6 + $0x1c] sm:$0xf]
    %v76 = vld [vmem:[#allocation6 + $0x20] sm:$0xf]
    %v77 = vld [vmem:[#allocation6 + $0x24] sm:$0xf]
    %v78 = vld [vmem:[#allocation6 + $0x28] sm:$0xf]
    %v79 = vld [vmem:[#allocation6 + $0x2c] sm:$0xf]
    %v80 = vld [vmem:[#allocation6 + $0x30] sm:$0xf]
    %v81 = vld [vmem:[#allocation6 + $0x34] sm:$0xf]
    %v82 = vld [vmem:[#allocation6 + $0x38] sm:$0xf]
    %v83 = vld [vmem:[#allocation6 + $0x3c] sm:$0xf]
    %v100 = vunpack.c.l.b16 %v68
    %v101 = vunpack.c.l.b16 %v69
    %v102 = vunpack.c.l.b16 %v70
    %v103 = vunpack.c.l.b16 %v71
    %v104 = vunpack.c.l.b16 %v72
    %v105 = vunpack.c.l.b16 %v73
    %v106 = vunpack.c.l.b16 %v74
    %v107 = vunpack.c.l.b16 %v75
    %v108 = vunpack.c.l.b16 %v76
    %v109 = vunpack.c.l.b16 %v77
    %v110 = vunpack.c.l.b16 %v78
    %v111 = vunpack.c.l.b16 %v79
    %v112 = vunpack.c.l.b16 %v80
    %v113 = vunpack.c.l.b16 %v81
    %v114 = vunpack.c.l.b16 %v82
    %v115 = vunpack.c.l.b16 %v83
    %v116 = vpack.c.b16 %v101, %v100
    %v117 = vpack.c.b16 %v103, %v102
    %v118 = vpack.c.b16 %v105, %v104
    %v119 = vpack.c.b16 %v107, %v106
    %v120 = vpack.c.b16 %v109, %v108
    %v121 = vpack.c.b16 %v111, %v110
    %v122 = vpack.c.b16 %v113, %v112
    %v123 = vpack.c.b16 %v115, %v114
    %132 = vmatpush.bf16.msra.mxu0 %v123
    %133 = vmatpush.bf16.msra.mxu0 %v122
    %134 = vmatpush.bf16.msra.mxu0 %v121
    %135 = vmatpush.bf16.msra.mxu0 %v120
    %136 = vmatpush.bf16.msra.mxu0 %v119
    %137 = vmatpush.bf16.msra.mxu0 %v118
    %138 = vmatpush.bf16.msra.mxu0 %v117
    %139 = vmatpush.bf16.msra.mxu0 %v116
    %140 = vmatmul.bf16.gmra.mxu0 %v62
    %v141 = vpop.f32.mrf.mxu0
    %v142 = vadd.f32 0.0, %v141
    %v143 = vpop.f32.mrf.mxu0
    %v144 = vadd.f32 0.0, %v143
    %145 = vmatmul.bf16.gmra.mxu0 %v63
    %v146 = vpop.f32.mrf.mxu0
    %v147 = vadd.f32 0.0, %v146
    %v148 = vpop.f32.mrf.mxu0
    %v149 = vadd.f32 0.0, %v148
    %150 = vdwg.mxu0
    %v151 = vadd.f32 %v64, %v142
    %v152 = vadd.f32 %v65, %v144
    %v153 = vadd.f32 %v66, %v147
    %v154 = vadd.f32 %v67, %v149
    %155 = vst [vmem:[#allocation2] sm:$0xff] %v151
    %156 = vst [vmem:[#allocation2 + $0x8] sm:$0xff] %v152
    %157 = vst [vmem:[#allocation2 + $0x10] sm:$0xff] %v153
    %158 = vst [vmem:[#allocation2 + $0x18] sm:$0xff] %v154
    // Predicated region
    $region26: #{tpu_custom_call.1} parent=1 // pred_check
      %p159 = pneg %p45
    $region27: #{tpu_custom_call.1} parent=1 // pred_check_branch
      %161 = sbr.rel (%p159) target = $region29
    $region28: #{tpu_custom_call.1} parent=1 // pred_region
      %v162 = vld [vmem:[#allocation2] sm:$0xff]
      %v163 = vld [vmem:[#allocation2 + $0x8] sm:$0xff]
      %v164 = vld [vmem:[#allocation2 + $0x10] sm:$0xff]
      %v165 = vld [vmem:[#allocation2 + $0x18] sm:$0xff]
      %v166 = vld [vmem:[%s2] sm:$0x1]
      %v168 = vperm.slane %v166, 0
      %v170 = vadd.f32 %v162, %v168
      %v171 = vadd.f32 %v163, %v168
      %v172 = vadd.f32 %v164, %v168
      %v173 = vadd.f32 %v165, %v168
      %174 = vst [vmem:[#allocation8] sm:$0xff] %v170
      %175 = vst [vmem:[#allocation8 + $0x8] sm:$0xff] %v171
      %176 = vst [vmem:[#allocation8 + $0x10] sm:$0xff] %v172
      %177 = vst [vmem:[#allocation8 + $0x18] sm:$0xff] %v173
    $region29: #{tpu_custom_call.1} parent=1 // pred_fallthru
      _
    // Predicated region
    $region30: #{tpu_custom_call.1} parent=1 // pred_check
      _
    $region31: #{tpu_custom_call.1} parent=1 // pred_check_branch
      %179 = sbr.rel (0) target = $region33
    $region32: #{tpu_custom_call.1} parent=1 // pred_region
      %181 = vsyncadd [#allocation5], 0
      %s182 = sshll.u32 [#allocation8], 4
      %s183 = int_to_ptr.vmem [resolvable:$true] %s182
      %s184 = sshll.u32 %s3, 4
      %s185 = int_to_ptr.hbm [resolvable:$true] %s184
      %190 = dma.vmem_to_hbm [thread:$0]  %s183, 512, %s185, [#allocation5], 128, 128, 8
    $region33: #{tpu_custom_call.1} parent=1 // pred_fallthru
      _
    // Predicated region
    $region34: #{tpu_custom_call.1} parent=1 // pred_check
      _
    $region35: #{tpu_custom_call.1} parent=1 // pred_check_branch
      %192 = sbr.rel (0) target = $region37
    $region36: #{tpu_custom_call.1} parent=1 // pred_region
      %194 = dma.done [#allocation5], 512
    $region37: #{tpu_custom_call.1} parent=1 // pred_fallthru
      _
    %195 = vsyncpa [#allocation4], 1
    %196 = vsyncpa [#allocation7], 1
    %197 = vsyncpa [#allocation5], 1

</llo_original>
